<compile_context>
chip_gen: v6e
topology: v6e:2x2x1
jax: 0.10.0
libtpu: 0.0.40
codegen_flags: <defaults>
</compile_context>

<pallas_src>
import functools

import jax
import jax.numpy as jnp
from jax.experimental import pallas as pl
from jax.experimental.pallas import tpu as pltpu


def _round_up(v: int, m: int) -> int:
    return ((v + m - 1) // m) * m


def _ncc_kernel(x_ref, y_ref, o_ref, *, hw: int, num_c: int,
                min_patch_variance: float):
    # x_ref, y_ref: (TN, C*HW) blocks in natural layout; o_ref: (TN, 1).
    inv_c = 1.0 / num_c
    inv_hw = 1.0 / hw

    # Per-pixel channel mean from static lane slices [c*HW, (c+1)*HW),
    # upcasting each (narrow-dtype) slab after the DMA.
    x_c = x_ref[:, pl.ds(0, hw)].astype(jnp.float32)
    y_c = y_ref[:, pl.ds(0, hw)].astype(jnp.float32)
    for c in range(1, num_c):
        x_c = x_c + x_ref[:, pl.ds(c * hw, hw)].astype(jnp.float32)
        y_c = y_c + y_ref[:, pl.ds(c * hw, hw)].astype(jnp.float32)
    x_c = x_c * inv_c                                        # (TN, HW)
    y_c = y_c * inv_c

    # Two-pass centered moments (matches the reference numerics; avoids the
    # one-pass sxx - sx^2/HW cancellation flagged in the review).
    x_mean = jnp.sum(x_c, axis=1, keepdims=True) * inv_hw    # (TN, 1)
    y_mean = jnp.sum(y_c, axis=1, keepdims=True) * inv_hw
    xn = x_c - x_mean
    yn = y_c - y_mean

    x_var = jnp.sum(xn * xn, axis=1, keepdims=True)          # (TN, 1)
    y_var = jnp.sum(yn * yn, axis=1, keepdims=True)
    norm = jnp.sum(xn * yn, axis=1, keepdims=True)

    denom = jnp.sqrt(x_var * y_var + 1e-06)
    ncc_v = norm / (denom + 1e-06)                           # exact divide

    not_valid = (x_var < min_patch_variance) | (y_var < min_patch_variance)
    ncc_v = jnp.where(not_valid, 1.0, ncc_v)

    score = 1.0 - jnp.clip(ncc_v, -1.0, 1.0)                 # (TN, 1)
    o_ref[...] = score.astype(o_ref.dtype)


def ncc(x, y, patch_size: int = 11, min_patch_variance: float = 0.01):
    """x, y: (N, C, H, W) float arrays. Returns (N, 1, 1, 1) float32 scores."""
    del patch_size  # implied by the spatial dims of the input
    N, C, H, W = x.shape
    assert y.shape == x.shape
    HW = H * W
    CHW = C * HW

    # Natural contiguous layout: pure reshape, no HBM copy (no transpose/pad).
    x2 = x.reshape(N, CHW)
    y2 = y.reshape(N, CHW)

    # Batch tile: multiple of 8 (sublane), capped at 1024 so two
    # double-buffered f32 input blocks (+ kernel temporaries) stay well under
    # the default scoped-VMEM limit on every generation (v5e caveat in the
    # review).  For N > 8 we always use >= 2 grid steps so both v7x
    # TensorCores get work on the "parallel" axis.
    TN_MAX = 1024
    if N <= 8:
        tn = N                                  # single full block
    else:
        t = max(2, pl.cdiv(N, TN_MAX))
        tn = min(TN_MAX, _round_up(pl.cdiv(N, t), 8))
    grid = pl.cdiv(N, tn)
    # The last block may be partial: OOB input rows are garbage confined to
    # their own (discarded) output rows; OOB output stores are dropped.

    kernel = functools.partial(_ncc_kernel, hw=HW, num_c=C,
                               min_patch_variance=min_patch_variance)

    out = pl.pallas_call(
        kernel,
        out_shape=jax.ShapeDtypeStruct((N, 1), jnp.float32),
        grid_spec=pltpu.PrefetchScalarGridSpec(
            num_scalar_prefetch=0,
            grid=(grid,),
            in_specs=[
                pl.BlockSpec((tn, CHW), lambda i: (i, 0)),
                pl.BlockSpec((tn, CHW), lambda i: (i, 0)),
            ],
            out_specs=pl.BlockSpec((tn, 1), lambda i: (i, 0)),
        ),
        compiler_params=pltpu.CompilerParams(
            dimension_semantics=("parallel",)),   # megacore-shardable on v7x
    )(x2, y2)

    return out.reshape(N, 1, 1, 1)


def _ncc_reference(x, y, min_patch_variance=0.01):
    # pure-JAX reference matching the PyTorch forward
    x = x.astype(jnp.float32)
    y = y.astype(jnp.float32)
    xm = jnp.mean(x, axis=1)
    ym = jnp.mean(y, axis=1)
    x_mean = jnp.mean(xm, axis=(1, 2), keepdims=True)
    y_mean = jnp.mean(ym, axis=(1, 2), keepdims=True)
    xn = xm - x_mean
    yn = ym - y_mean
    norm = jnp.sum(xn * yn, axis=(1, 2))
    xv = jnp.sum(xn * xn, axis=(1, 2))
    yv = jnp.sum(yn * yn, axis=(1, 2))
    denom = jnp.sqrt(xv * yv + 1e-06)
    ncc_v = norm / (denom + 1e-06)
    not_valid = (xv < min_patch_variance) | (yv < min_patch_variance)
    ncc_v = jnp.where(not_valid, 1.0, ncc_v)
    score = 1.0 - jnp.clip(ncc_v, -1.0, 1.0)
    return score[:, None, None, None]


if __name__ == "__main__":
    key = jax.random.PRNGKey(0)
    kx, ky = jax.random.split(key)

    # Small batch of RGB 11x11 patches (patch_size=11 default of the module).
    N, C, H, W = 4, 3, 11, 11
    x = jax.random.normal(kx, (N, C, H, W), dtype=jnp.float32)
    y = 0.5 * x + 0.5 * jax.random.normal(ky, (N, C, H, W), dtype=jnp.float32)

    out = jax.block_until_ready(ncc(x, y))
    ref = _ncc_reference(x, y)
    assert out.shape == (N, 1, 1, 1), out.shape
    assert jnp.allclose(out, ref, atol=2e-3, rtol=2e-3), (out, ref)

    # Exercise the multi-step grid, partial-last-block, bf16 (no wrapper
    # upcast) path: N=600 -> tn=304, grid=2, last block has 8 OOB rows.
    N2 = 600
    k1, k2 = jax.random.split(jax.random.PRNGKey(1))
    xb = jax.random.normal(k1, (N2, C, H, W), dtype=jnp.float32)
    yb = 0.5 * xb + 0.5 * jax.random.normal(k2, (N2, C, H, W), dtype=jnp.float32)
    xb = xb.astype(jnp.bfloat16)
    yb = yb.astype(jnp.bfloat16)

    out2 = jax.block_until_ready(ncc(xb, yb))
    ref2 = _ncc_reference(xb, yb)
    assert out2.shape == (N2, 1, 1, 1), out2.shape
    assert jnp.allclose(out2, ref2, atol=5e-3, rtol=5e-3), (out2, ref2)

    print("KERNEL_OK")
</pallas_src>

<mosaic_0001>
module attributes {stable_mosaic.version = 11 : i64} {
  func.func @_ncc_kernel(%arg0: i32, %arg1: memref<4x363xf32, #tpu.memory_space<vmem>>, %arg2: memref<4x363xf32, #tpu.memory_space<vmem>>, %arg3: memref<4x1xf32, #tpu.memory_space<vmem>>) attributes {dimension_semantics = [#tpu.dimension_semantics<parallel>], iteration_bounds = array<i64: 1>, scalar_prefetch = 0 : i64, scratch_operands = 0 : i64, tpu.core_type = #tpu.core_type<tc>, window_params = [{transform_indices = @transform_0, window_bounds = array<i64: 4, 363>}, {transform_indices = @transform_1, window_bounds = array<i64: 4, 363>}, {transform_indices = @transform_2, window_bounds = array<i64: 4, 1>}]} {
    %c0 = arith.constant 0 : index
    %c0_0 = arith.constant 0 : index
    %0 = vector.load %arg1[%c0, %c0_0] : memref<4x363xf32, #tpu.memory_space<vmem>>, vector<4x121xf32>
    %c0_1 = arith.constant 0 : index
    %c0_2 = arith.constant 0 : index
    %1 = vector.load %arg2[%c0_1, %c0_2] : memref<4x363xf32, #tpu.memory_space<vmem>>, vector<4x121xf32>
    %c0_3 = arith.constant 0 : index
    %c121 = arith.constant 121 : index
    %2 = vector.load %arg1[%c0_3, %c121] : memref<4x363xf32, #tpu.memory_space<vmem>>, vector<4x121xf32>
    %3 = arith.addf %0, %2 : vector<4x121xf32>
    %c0_4 = arith.constant 0 : index
    %c121_5 = arith.constant 121 : index
    %4 = vector.load %arg2[%c0_4, %c121_5] : memref<4x363xf32, #tpu.memory_space<vmem>>, vector<4x121xf32>
    %5 = arith.addf %1, %4 : vector<4x121xf32>
    %c0_6 = arith.constant 0 : index
    %c242 = arith.constant 242 : index
    %6 = vector.load %arg1[%c0_6, %c242] : memref<4x363xf32, #tpu.memory_space<vmem>>, vector<4x121xf32>
    %7 = arith.addf %3, %6 : vector<4x121xf32>
    %c0_7 = arith.constant 0 : index
    %c242_8 = arith.constant 242 : index
    %8 = vector.load %arg2[%c0_7, %c242_8] : memref<4x363xf32, #tpu.memory_space<vmem>>, vector<4x121xf32>
    %9 = arith.addf %5, %8 : vector<4x121xf32>
    %cst = arith.constant 0.333333343 : f32
    %10 = vector.broadcast %cst : f32 to vector<4x121xf32>
    %11 = arith.mulf %7, %10 : vector<4x121xf32>
    %cst_9 = arith.constant 0.333333343 : f32
    %12 = vector.broadcast %cst_9 : f32 to vector<4x121xf32>
    %13 = arith.mulf %9, %12 : vector<4x121xf32>
    %cst_10 = arith.constant dense<0.000000e+00> : vector<4xf32>
    %14 = vector.multi_reduction <add>, %11, %cst_10 [1] : vector<4x121xf32> to vector<4xf32>
    %15 = vector.shape_cast %14 : vector<4xf32> to vector<4x1xf32>
    %cst_11 = arith.constant 0.00826446246 : f32
    %16 = vector.broadcast %cst_11 : f32 to vector<4x1xf32>
    %17 = arith.mulf %15, %16 : vector<4x1xf32>
    %cst_12 = arith.constant dense<0.000000e+00> : vector<4xf32>
    %18 = vector.multi_reduction <add>, %13, %cst_12 [1] : vector<4x121xf32> to vector<4xf32>
    %19 = vector.shape_cast %18 : vector<4xf32> to vector<4x1xf32>
    %cst_13 = arith.constant 0.00826446246 : f32
    %20 = vector.broadcast %cst_13 : f32 to vector<4x1xf32>
    %21 = arith.mulf %19, %20 : vector<4x1xf32>
    %22 = vector.broadcast %17 : vector<4x1xf32> to vector<4x121xf32>
    %23 = arith.subf %11, %22 : vector<4x121xf32>
    %24 = vector.broadcast %21 : vector<4x1xf32> to vector<4x121xf32>
    %25 = arith.subf %13, %24 : vector<4x121xf32>
    %26 = arith.mulf %23, %23 : vector<4x121xf32>
    %cst_14 = arith.constant dense<0.000000e+00> : vector<4xf32>
    %27 = vector.multi_reduction <add>, %26, %cst_14 [1] : vector<4x121xf32> to vector<4xf32>
    %28 = vector.shape_cast %27 : vector<4xf32> to vector<4x1xf32>
    %29 = arith.mulf %25, %25 : vector<4x121xf32>
    %cst_15 = arith.constant dense<0.000000e+00> : vector<4xf32>
    %30 = vector.multi_reduction <add>, %29, %cst_15 [1] : vector<4x121xf32> to vector<4xf32>
    %31 = vector.shape_cast %30 : vector<4xf32> to vector<4x1xf32>
    %32 = arith.mulf %23, %25 : vector<4x121xf32>
    %cst_16 = arith.constant dense<0.000000e+00> : vector<4xf32>
    %33 = vector.multi_reduction <add>, %32, %cst_16 [1] : vector<4x121xf32> to vector<4xf32>
    %34 = vector.shape_cast %33 : vector<4xf32> to vector<4x1xf32>
    %35 = arith.mulf %28, %31 : vector<4x1xf32>
    %cst_17 = arith.constant 9.99999997E-7 : f32
    %36 = vector.broadcast %cst_17 : f32 to vector<4x1xf32>
    %37 = arith.addf %35, %36 : vector<4x1xf32>
    %38 = math.sqrt %37 : vector<4x1xf32>
    %cst_18 = arith.constant 9.99999997E-7 : f32
    %39 = vector.broadcast %cst_18 : f32 to vector<4x1xf32>
    %40 = arith.addf %38, %39 : vector<4x1xf32>
    %41 = arith.divf %34, %40 : vector<4x1xf32>
    %cst_19 = arith.constant 0.00999999977 : f32
    %42 = vector.broadcast %cst_19 : f32 to vector<4x1xf32>
    %43 = arith.cmpf olt, %28, %42 : vector<4x1xf32>
    %cst_20 = arith.constant 0.00999999977 : f32
    %44 = vector.broadcast %cst_20 : f32 to vector<4x1xf32>
    %45 = arith.cmpf olt, %31, %44 : vector<4x1xf32>
    %46 = arith.ori %43, %45 : vector<4x1xi1>
    %cst_21 = arith.constant 1.000000e+00 : f32
    %47 = vector.broadcast %cst_21 : f32 to vector<4x1xf32>
    %48 = arith.select %46, %47, %41 : vector<4x1xi1>, vector<4x1xf32>
    %cst_22 = arith.constant -1.000000e+00 : f32
    %cst_23 = arith.constant 1.000000e+00 : f32
    %49 = vector.broadcast %cst_22 : f32 to vector<4x1xf32>
    %50 = arith.maximumf %49, %48 : vector<4x1xf32>
    %51 = vector.broadcast %cst_23 : f32 to vector<4x1xf32>
    %52 = arith.minimumf %51, %50 : vector<4x1xf32>
    %cst_24 = arith.constant 1.000000e+00 : f32
    %53 = vector.broadcast %cst_24 : f32 to vector<4x1xf32>
    %54 = arith.subf %53, %52 : vector<4x1xf32>
    %c0_25 = arith.constant 0 : index
    %c0_26 = arith.constant 0 : index
    %55 = vector.load %arg3[%c0_25, %c0_26] : memref<4x1xf32, #tpu.memory_space<vmem>>, vector<4x1xf32>
    tpu.vector_store %arg3[%c0_25, %c0_26], %54 {strides = array<i32>} : memref<4x1xf32, #tpu.memory_space<vmem>>, vector<4x1xf32>,
    return
  }
  func.func @transform_0(%arg0: i32) -> (i32, i32) {
    %c0_i32 = arith.constant 0 : i32
    %c0_i32_0 = arith.constant 0 : i32
    return %arg0, %c0_i32 : i32, i32
  }
  func.func @transform_1(%arg0: i32) -> (i32, i32) {
    %c0_i32 = arith.constant 0 : i32
    %c0_i32_0 = arith.constant 0 : i32
    return %arg0, %c0_i32 : i32, i32
  }
  func.func @transform_2(%arg0: i32) -> (i32, i32) {
    %c0_i32 = arith.constant 0 : i32
    %c0_i32_0 = arith.constant 0 : i32
    return %arg0, %c0_i32 : i32, i32
  }
}

</mosaic_0001>

<llo_original>
// kernel: tpu_custom_call.1
$region0: #{tpu_custom_call.1}
  #allocation0 [shape = 'u32[]', space=smem, size = 0x4, offset = 0x4, fixed_abs, tag = 'smem constant byte address 0x4 - core index']
  #allocation1 [shape = 'u32[144,128]{1,0:T(1,128)}', space=vmem, size = 0x12000, scoped, tag = 'internal scratch']
  %s0 = inlined_call_operand.hbm [shape: f32[4,363], index: 0, kind: input, shape index: {}]
  %s1 = inlined_call_operand.hbm [shape: f32[4,363], index: 1, kind: input, shape index: {}]
  %s2 = inlined_call_operand.vmem [shape: f32[4,1], index: 2, kind: output, shape index: {}]
  %s3 = sld [smem:[#allocation0]]
  $region26: #{tpu_custom_call.1} parent=0
    _
  %s5 = ssub.s32 1, %s3
  %s6 = scalar_select 0, %s5, %s3
  $region1: #{tpu_custom_call.1} parent=0
    #allocation2 [shape = 'u8[6144]{0}', space=vmem, size = 0x1800, scoped, tag = 'input window, operand 0, single buffered']
    #allocation3 [shape = 's32[1]{0}', space=sflag, size = 0x4, scoped, tag = 'scoped memory for tpu_custom_call.1']
    #allocation4 [shape = 'u8[6144]{0}', space=vmem, size = 0x1800, scoped, tag = 'input window, operand 1, single buffered']
    #allocation5 [shape = 's32[1]{0}', space=sflag, size = 0x4, scoped, tag = 'scoped memory for tpu_custom_call.1']
    %7 = vsyncpa [#allocation3], 0
    %8 = vsyncpa [#allocation5], 0
    // Predicated region
    $region2: #{tpu_custom_call.1} parent=1 // pred_check
      _
    $region3: #{tpu_custom_call.1} parent=1 // pred_check_branch
      %10 = sbr.rel (0) target = $region5
    $region4: #{tpu_custom_call.1} parent=1 // pred_region
      %s12 = ssub.s32 192, 192
      %13 = vsyncadd [#allocation3], %s12
      %s15 = sshll.u32 [#allocation2], 4
      %s16 = int_to_ptr.vmem [resolvable:$true] %s15
      %18 = dma.hbm_to_vmem [thread:$0]  %s0, 192, %s16, [#allocation3]
    $region5: #{tpu_custom_call.1} parent=1 // pred_fallthru
      _
    // Predicated region
    $region6: #{tpu_custom_call.1} parent=1 // pred_check
      _
    $region7: #{tpu_custom_call.1} parent=1 // pred_check_branch
      %20 = sbr.rel (0) target = $region9
    $region8: #{tpu_custom_call.1} parent=1 // pred_region
      %s22 = ssub.s32 192, 192
      %23 = vsyncadd [#allocation5], %s22
      %s25 = sshll.u32 [#allocation4], 4
      %s26 = int_to_ptr.vmem [resolvable:$true] %s25
      %28 = dma.hbm_to_vmem [thread:$0]  %s1, 192, %s26, [#allocation5]
    $region9: #{tpu_custom_call.1} parent=1 // pred_fallthru
      _
    // Predicated region
    $region10: #{tpu_custom_call.1} parent=1 // pred_check
      _
    $region11: #{tpu_custom_call.1} parent=1 // pred_check_branch
      %30 = sbr.rel (0) target = $region13
    $region12: #{tpu_custom_call.1} parent=1 // pred_region
      %31 = dma.done [#allocation3], 192
    $region13: #{tpu_custom_call.1} parent=1 // pred_fallthru
      _
    // Predicated region
    $region14: #{tpu_custom_call.1} parent=1 // pred_check
      _
    $region15: #{tpu_custom_call.1} parent=1 // pred_check_branch
      %33 = sbr.rel (0) target = $region17
    $region16: #{tpu_custom_call.1} parent=1 // pred_region
      %34 = dma.done [#allocation5], 192
    $region17: #{tpu_custom_call.1} parent=1 // pred_fallthru
      _
    %v35 = vld [vmem:[#allocation2] sm:$0xf]
    %v36 = vld [vmem:[#allocation4] sm:$0xf]
    %v37 = vld [vmem:[#allocation2] sm:$0xff]
    %39 = vrot.lane.b32.xlu0 %v37, 7
    %v40 = vpop.permute.xlu0 %39
    %v41 = vrot.slane %v40, 4
    %vm42 = vcmask 56320
    %v43 = vsel %vm42, %v40, %v41
    %v45 = vadd.f32 %v35, %v43
    %v46 = vld [vmem:[#allocation4] sm:$0xff]
    %48 = vrot.lane.b32.xlu0 %v46, 7
    %v49 = vpop.permute.xlu0 %48
    %v50 = vrot.slane %v49, 4
    %v51 = vsel %vm42, %v49, %v50
    %v53 = vadd.f32 %v36, %v51
    %v54 = vld [vmem:[#allocation2 + $0x4] sm:$0xff]
    %56 = vrot.lane.b32.xlu0 %v54, 14
    %v57 = vpop.permute.xlu0 %56
    %v58 = vrot.slane %v57, 4
    %vm59 = vcmask 113664
    %v60 = vsel %vm59, %v57, %v58
    %v62 = vadd.f32 %v45, %v60
    %v63 = vld [vmem:[#allocation4 + $0x4] sm:$0xff]
    %65 = vrot.lane.b32.xlu0 %v63, 14
    %v66 = vpop.permute.xlu0 %65
    %v67 = vrot.slane %v66, 4
    %v68 = vsel %vm59, %v66, %v67
    %v70 = vadd.f32 %v53, %v68
    %v71 = vmul.f32 %v62, 0.33333334
    %v72 = vmul.f32 %v70, 0.33333334
    %vm73 = vcmask 986112
    %v74 = vsel %vm73, %v71, 0.0
    %75 = vadd.xlane.f32.xlu0 %v74
    %v76 = vpop.xlane.xlu0 %75
    %v77 = vmul.f32 %v76, 0.008264462
    %v78 = vsel %vm73, %v72, 0.0
    %79 = vadd.xlane.f32.xlu0 %v78
    %v80 = vpop.xlane.xlu0 %79
    %v81 = vmul.f32 %v80, 0.008264462
    %v82 = vsub.f32 %v71, %v77
    %v83 = vsub.f32 %v72, %v81
    %v84 = vmul.f32 %v82, %v82
    %v85 = vsel %vm73, %v84, 0.0
    %86 = vadd.xlane.f32.xlu0 %v85
    %v87 = vpop.xlane.xlu0 %86
    %v88 = vmul.f32 %v83, %v83
    %v89 = vsel %vm73, %v88, 0.0
    %90 = vadd.xlane.f32.xlu0 %v89
    %v91 = vpop.xlane.xlu0 %90
    %v92 = vmul.f32 %v82, %v83
    %v93 = vsel %vm73, %v92, 0.0
    %94 = vadd.xlane.f32.xlu0 %v93
    %v95 = vpop.xlane.xlu0 %94
    %v96 = vmul.f32 %v87, %v91
    %v97 = vadd.f32 %v96, 1e-06
    %v98 = vrsqrt.pop %v97
    %v99 = vmul.f32 %v97, %v98
    %vm100 = vcmp.eq.f32.partialorder %v97, inf
    %v101 = vsel %vm100, %v97, %v99
    %vm102 = vcmp.eq.f32.partialorder %v97, 0.0
    %v103 = vand.u32 %v97, 2147483648
    %v104 = vsel %vm102, %v103, %v101
    %v105 = vadd.f32 %v104, 1e-06
    %v106 = vrcp.pop %v105
    %v107 = vmul.f32 %v95, %v106
    %vm108 = vcmp.lt.f32.partialorder %v87, 0.01
    %vm109 = vcmp.lt.f32.partialorder %v91, 0.01
    %vm110 = vmor %vm108, %vm109
    %v111 = vsel %vm110, 1.0, %v107
    %v112 = vmax.f32 %v111, -1.0
    %v113 = vmin.f32 %v112, 1.0
    %v114 = vsub.f32 1.0, %v113
    %vm115 = vcmask 3072
    %116 = vst.msk [vmem:[%s2] sm:$0xf] %vm115, %v114
    // Predicated region
    $region18: #{tpu_custom_call.1} parent=1 // pred_check
      _
    $region19: #{tpu_custom_call.1} parent=1 // pred_check_branch
      %118 = sbr.rel (0) target = $region21
    $region20: #{tpu_custom_call.1} parent=1 // pred_region
      _
    $region21: #{tpu_custom_call.1} parent=1 // pred_fallthru
      _
    // Predicated region
    $region22: #{tpu_custom_call.1} parent=1 // pred_check
      _
    $region23: #{tpu_custom_call.1} parent=1 // pred_check_branch
      %120 = sbr.rel (0) target = $region25
    $region24: #{tpu_custom_call.1} parent=1 // pred_region
      _
    $region25: #{tpu_custom_call.1} parent=1 // pred_fallthru
      _
    %121 = vsyncpa [#allocation3], 1
    %122 = vsyncpa [#allocation5], 1

</llo_original>
